<compile_context>
chip_gen: v5e
topology: v5e:2x2
jax: 0.10.0
libtpu: 0.0.40
codegen_flags: <defaults>
</compile_context>

<pallas_src>
import functools

import jax
import jax.numpy as jnp
from jax.experimental import pallas as pl
from jax.experimental.pallas import tpu as pltpu

VMEM_SPEC = pl.BlockSpec(memory_space=pltpu.MemorySpace.VMEM)
_LANES = 128
_SUBLANES = 8


def _round_up(x, m):
    return -(-x // m) * m


# ----------------------------------------------------------------------------
# Parameter packing: every tiny weight / bias goes into ONE [R, 128] f32 slab
# (row offsets sublane-aligned).  Biases are pre-scaled by (k_hops + 1).
# ----------------------------------------------------------------------------
def pack_params(params, *, k_hops):
    scale = float(k_hops + 1)
    (w_mm0, b_mm0), (w_mm1, b_mm1) = params["gcn_mm"]
    (w_dd0, b_dd0), (w_dd1, b_dd1) = params["gcn_dd"]
    (w_md0, b_md0), (w_md1, b_md1) = params["gcn_md"]
    out_feats = w_mm1.shape[1]

    pieces = [
        ("lin_m", params["lin_m_wt"]),
        ("lin_d", params["lin_d_wt"]),
        ("w_mm0", w_mm0), ("w_dd0", w_dd0), ("w_md0", w_md0),
        ("w_mm1", w_mm1), ("w_dd1", w_dd1), ("w_md1", w_md1),
        ("b_mm0", scale * b_mm0), ("b_dd0", scale * b_dd0), ("b_md0", scale * b_md0),
        ("b_mm1", scale * b_mm1), ("b_dd1", scale * b_dd1), ("b_md1", scale * b_md1),
        ("mlp_w", params["mlp_w"][:, 0].reshape(1, 2 * out_feats)),
        ("mlp_b", params["mlp_b"].reshape(1, 1)),
    ]
    offs, r = {}, 0
    for name, a in pieces:
        h, w = a.shape
        assert w <= _LANES
        offs[name] = (r, h, w)
        r += _round_up(h, _SUBLANES)
    slab = jnp.zeros((_round_up(r, _SUBLANES), _LANES), jnp.float32)
    for name, a in pieces:
        ro, h, w = offs[name]
        slab = slab.at[ro:ro + h, :w].set(a.astype(jnp.float32))
    return slab, offs


# ----------------------------------------------------------------------------
# In-kernel helpers (values only; everything stays in vregs/VMEM)
# ----------------------------------------------------------------------------
def _conv_layer(p, feat, w, b, *, k_hops):
    """MINIMDA ConvLayer (method='sum', bias, relu), shared W0/b0 across hops:
         rst = (feat + sum_{i=1..k} P^i feat) @ W0 + (k+1)*b0 ; relu
       Bias comes in pre-scaled by (k+1).  Projection is hoisted before the
       hop loop whenever it narrows the hop width (same math, fewer FLOPs)."""
    project_first = w.shape[1] <= w.shape[0]
    h = jnp.dot(feat, w, preferred_element_type=jnp.float32) if project_first else feat
    acc = h
    for _ in range(k_hops):
        h = jnp.dot(p, h, preferred_element_type=jnp.float32)
        acc = acc + h
    if not project_first:
        acc = jnp.dot(acc, w, preferred_element_type=jnp.float32)
    return jnp.maximum(acc + b, 0.0)


def _graph_embed(p, feat, w0, b0, w1, b1, *, k_hops):
    h = _conv_layer(p, feat, w0, b0, k_hops=k_hops)
    return _conv_layer(p, h, w1, b1, k_hops=k_hops)


# ----------------------------------------------------------------------------
# Fused forward kernel (grid=(), whole-block VMEM resident)
# ----------------------------------------------------------------------------
def minimda_fused_kernel(p_mm_ref, p_dd_ref, p_md_ref, mir_ref, dis_ref,
                         sel_m_ref, sel_d_ref, par_ref, out_ref,
                         *, k_hops, n_mirna, offs):
    def par(name):
        ro, h, w = offs[name]
        return par_ref[ro:ro + h, :w]          # static slice of the param slab

    mir = mir_ref[...]                          # [n_m, n_m]
    dis = dis_ref[...]                          # [n_d, n_d]

    # --- three graph embeddings (intermediates never touch HBM) -------------
    emb_mm_sim = _graph_embed(p_mm_ref[...], mir,
                              par("w_mm0"), par("b_mm0"),
                              par("w_mm1"), par("b_mm1"), k_hops=k_hops)
    emb_dd_sim = _graph_embed(p_dd_ref[...], dis,
                              par("w_dd0"), par("b_dd0"),
                              par("w_dd1"), par("b_dd1"), k_hops=k_hops)

    xm = jnp.dot(mir, par("lin_m"), preferred_element_type=jnp.float32)
    xd = jnp.dot(dis, par("lin_d"), preferred_element_type=jnp.float32)
    x_md = jnp.concatenate([xm, xd], axis=0)    # [n_m + n_d, in_feats]
    emb_ass = _graph_embed(p_md_ref[...], x_md,
                           par("w_md0"), par("b_md0"),
                           par("w_md1"), par("b_md1"), k_hops=k_hops)

    # --- lane-packed gather: [emb_sim | emb_ass] -> 128 lanes, 2 matmuls ----
    # NOTE: n_mirna must stay sublane (8) aligned at real dataset sizes so the
    # split / concat below does not cross (8,128) tile boundaries.
    emb_mm = jnp.concatenate([emb_mm_sim, emb_ass[:n_mirna]], axis=-1)  # [n_m,128]
    emb_dd = jnp.concatenate([emb_dd_sim, emb_ass[n_mirna:]], axis=-1)  # [n_d,128]
    emb_m = jnp.dot(sel_m_ref[...], emb_mm, preferred_element_type=jnp.float32)
    emb_d = jnp.dot(sel_d_ref[...], emb_dd, preferred_element_type=jnp.float32)

    # --- score head: one VPU multiply + one contraction -> lane-dense [1, S]
    prod = emb_m * emb_d                                   # [S, 128]
    logits = jax.lax.dot_general(par("mlp_w"), prod,
                                 (((1,), (1,)), ((), ())),
                                 preferred_element_type=jnp.float32)   # [1, S]
    out_ref[...] = jax.nn.sigmoid(logits + par("mlp_b"))


# ----------------------------------------------------------------------------
# Wrapper / model glue (tiny XLA preprocessing, single pallas_call)
# ----------------------------------------------------------------------------
def _fold_norm(adj):
    """P = diag(d^-1/2) A^T diag(d^-1/2), d = out-degree clamped to >= 1
    (matches the reference, which uses the same out-degree norm on both sides)."""
    deg = jnp.maximum(jnp.sum(adj, axis=1, keepdims=True), 1.0)
    norm = jax.lax.rsqrt(deg)                               # [N, 1]
    return (norm * adj * norm.T).T


def minimda_forward(param_slab, adj_mm, adj_dd, adj_md, miRNA, disease, samples,
                    *, offs, n_mirna, n_disease, k_hops):
    # Fold the symmetric degree normalisation into each adjacency once
    # (shared by both ConvLayers of that graph).
    p_mm = _fold_norm(adj_mm)
    p_dd = _fold_norm(adj_dd)
    p_md = _fold_norm(adj_md)

    # One-hot gather matrices for the sampled (miRNA, disease) pairs.
    sel_m = jax.nn.one_hot(samples[:, 0].astype(jnp.int32), n_mirna, dtype=jnp.float32)
    sel_d = jax.nn.one_hot(samples[:, 1].astype(jnp.int32), n_disease, dtype=jnp.float32)

    n_samples = samples.shape[0]
    in_feats = offs["lin_m"][2]
    hid = offs["w_mm0"][2]
    out_feats = offs["w_mm1"][2]

    # Rough roofline hint for XLA's scheduler around the fused call.
    def conv_fl(n, f, o):
        if o <= f:   # project first
            return 2 * n * f * o + k_hops * 2 * n * n * o
        return k_hops * 2 * n * n * f + 2 * n * f * o
    n_md = n_mirna + n_disease
    flops = (conv_fl(n_mirna, n_mirna, hid) + conv_fl(n_mirna, hid, out_feats)
             + conv_fl(n_disease, n_disease, hid) + conv_fl(n_disease, hid, out_feats)
             + 2 * n_mirna * n_mirna * in_feats + 2 * n_disease * n_disease * in_feats
             + conv_fl(n_md, in_feats, hid) + conv_fl(n_md, hid, out_feats)
             + 2 * n_samples * (n_mirna + n_disease) * 2 * out_feats
             + 4 * n_samples * 2 * out_feats)

    inputs = (p_mm, p_dd, p_md, miRNA, disease, sel_m, sel_d, param_slab)
    in_bytes = sum(int(x.size) * 4 for x in inputs) + 4 * n_samples
    # Scoped-VMEM defaults (16 MiB v5e / 32 MiB v6e,v7x) reject whole-block
    # residency long before physical VMEM at real sizes; size from footprint.
    vmem_limit = int(min(max(8 * in_bytes, 8 << 20), 48 << 20))

    kern = functools.partial(minimda_fused_kernel, k_hops=k_hops,
                             n_mirna=n_mirna, offs=offs)

    # NOTE: at real dataset sizes (N in the thousands) the [N,N] P matrices
    # should be cast to bf16 (v7x: 64 MiB VMEM/TC) and the hop matmul tiled as
    # a (tm "parallel", tk "arbitrary") reduction grid so the second v7x
    # TensorCore is used; at these toy sizes a single grid-less VMEM-resident
    # kernel is dispatch/DMA-latency dominated and optimal.
    out = pl.pallas_call(
        kern,
        out_shape=jax.ShapeDtypeStruct((1, n_samples), jnp.float32),
        in_specs=[VMEM_SPEC] * len(inputs),
        out_specs=VMEM_SPEC,
        compiler_params=pltpu.CompilerParams(vmem_limit_bytes=vmem_limit),
        cost_estimate=pl.CostEstimate(flops=int(flops),
                                      transcendentals=int(n_samples),
                                      bytes_accessed=int(in_bytes)),
    )(*inputs)
    return out.reshape(-1)


# ----------------------------------------------------------------------------
# Deterministic parameter / input construction
# ----------------------------------------------------------------------------
def xavier_uniform(key, fin, fout):
    a = (6.0 / (fin + fout)) ** 0.5
    return jax.random.uniform(key, (fin, fout), jnp.float32, minval=-a, maxval=a)


def make_gcn_params(key, dims):
    """dims = [(fin0, fout0), (fin1, fout1)] — one (W0, b0) per ConvLayer."""
    layers = []
    for (fin, fout) in dims:
        key, sub = jax.random.split(key)
        layers.append((xavier_uniform(sub, fin, fout),
                       jnp.zeros((1, fout), jnp.float32)))
    return layers, key


if __name__ == "__main__":
    # args (toy sizes consistent with the module; node counts multiples of 8)
    miRNA_number = 16
    disease_number = 16
    in_feats = 32
    hid_feats = 32
    out_feats = 64            # mlp_ = Linear(128, 1) requires 2*out_feats == 128
    k = 2                     # args.k=2 -> self.k=3 -> 2 propagation hops
    n_samples = 8

    key = jax.random.PRNGKey(0)

    # parameters
    params = {}
    key, km, kd, kw = jax.random.split(key, 4)
    params["lin_m_wt"] = xavier_uniform(km, miRNA_number, in_feats)   # Linear.weight.T
    params["lin_d_wt"] = xavier_uniform(kd, disease_number, in_feats)
    params["mlp_w"] = xavier_uniform(kw, 2 * out_feats, 1)            # Linear(128, 1)
    params["mlp_b"] = jnp.zeros((1, 1), jnp.float32)

    params["gcn_mm"], key = make_gcn_params(key, [(miRNA_number, hid_feats),
                                                  (hid_feats, out_feats)])
    params["gcn_dd"], key = make_gcn_params(key, [(disease_number, hid_feats),
                                                  (hid_feats, out_feats)])
    params["gcn_md"], key = make_gcn_params(key, [(in_feats, hid_feats),
                                                  (hid_feats, out_feats)])

    # inputs: similarity matrices as node features, dense adjacency graphs
    key, k1, k2, k3, k4, k5, k6, k7 = jax.random.split(key, 8)
    miRNA = jax.random.uniform(k1, (miRNA_number, miRNA_number), jnp.float32)
    disease = jax.random.uniform(k2, (disease_number, disease_number), jnp.float32)
    adj_mm = (jax.random.uniform(k3, (miRNA_number, miRNA_number)) < 0.3).astype(jnp.float32)
    adj_dd = (jax.random.uniform(k4, (disease_number, disease_number)) < 0.3).astype(jnp.float32)
    n_md = miRNA_number + disease_number
    adj_md = (jax.random.uniform(k5, (n_md, n_md)) < 0.3).astype(jnp.float32)
    samples = jnp.stack([
        jax.random.randint(k6, (n_samples,), 0, miRNA_number),
        jax.random.randint(k7, (n_samples,), 0, disease_number),
    ], axis=1)

    # Pack all small parameters into one VMEM slab (one DMA); biases prescaled
    # by (k+1) because the reference ConvLayer adds biases[0] once per hop term.
    param_slab, offs = pack_params(params, k_hops=k)

    # TODO(synk): nn.Dropout / BatchNorm branches are disabled by the default
    # config (dropout=0.0, batchnorm=False); the unused self.mlp Sequential is
    # dead code in the reference forward and is intentionally not built.

    fwd = jax.jit(functools.partial(minimda_forward,
                                    offs=offs,
                                    n_mirna=miRNA_number,
                                    n_disease=disease_number,
                                    k_hops=k))
    out = fwd(param_slab, adj_mm, adj_dd, adj_md, miRNA, disease, samples)
    out = jax.block_until_ready(out)
    assert out.shape == (n_samples,)
    assert bool(jnp.all(jnp.isfinite(out)))
    print("KERNEL_OK")
</pallas_src>

<mosaic_0001>
module attributes {stable_mosaic.version = 11 : i64} {
  func.func @minimda_fused_kernel(%arg0: memref<16x16xf32, #tpu.memory_space<vmem>>, %arg1: memref<16x16xf32, #tpu.memory_space<vmem>>, %arg2: memref<32x32xf32, #tpu.memory_space<vmem>>, %arg3: memref<16x16xf32, #tpu.memory_space<vmem>>, %arg4: memref<16x16xf32, #tpu.memory_space<vmem>>, %arg5: memref<8x16xf32, #tpu.memory_space<vmem>>, %arg6: memref<8x16xf32, #tpu.memory_space<vmem>>, %arg7: memref<256x128xf32, #tpu.memory_space<vmem>>, %arg8: memref<1x8xf32, #tpu.memory_space<vmem>>) attributes {dimension_semantics = [], scalar_prefetch = 0 : i64, scratch_operands = 0 : i64, tpu.core_type = #tpu.core_type<tc>} {
    %c0 = arith.constant 0 : index
    %c0_0 = arith.constant 0 : index
    %0 = vector.load %arg3[%c0, %c0_0] : memref<16x16xf32, #tpu.memory_space<vmem>>, vector<16x16xf32>
    %c0_1 = arith.constant 0 : index
    %c0_2 = arith.constant 0 : index
    %1 = vector.load %arg4[%c0_1, %c0_2] : memref<16x16xf32, #tpu.memory_space<vmem>>, vector<16x16xf32>
    %c0_3 = arith.constant 0 : index
    %c0_4 = arith.constant 0 : index
    %2 = vector.load %arg0[%c0_3, %c0_4] : memref<16x16xf32, #tpu.memory_space<vmem>>, vector<16x16xf32>
    %c32 = arith.constant 32 : index
    %c0_5 = arith.constant 0 : index
    %3 = vector.load %arg7[%c32, %c0_5] : memref<256x128xf32, #tpu.memory_space<vmem>>, vector<16x32xf32>
    %c192 = arith.constant 192 : index
    %c0_6 = arith.constant 0 : index
    %4 = vector.load %arg7[%c192, %c0_6] : memref<256x128xf32, #tpu.memory_space<vmem>>, vector<1x32xf32>
    %c96 = arith.constant 96 : index
    %c0_7 = arith.constant 0 : index
    %5 = vector.load %arg7[%c96, %c0_7] : memref<256x128xf32, #tpu.memory_space<vmem>>, vector<32x64xf32>
    %c216 = arith.constant 216 : index
    %c0_8 = arith.constant 0 : index
    %6 = vector.load %arg7[%c216, %c0_8] : memref<256x128xf32, #tpu.memory_space<vmem>>, vector<1x64xf32>
    %cst = arith.constant dense<0.000000e+00> : vector<16x16xf32>
    %7 = tpu.matmul %2, %0, %cst {dimension_numbers = #tpu.dot_dimension_numbers<[1], [0], [0], [1], [0, 0, 1, 1], [], []>} : vector<16x16xf32>, vector<16x16xf32>, vector<16x16xf32> -> vector<16x16xf32>
    %8 = arith.addf %0, %7 : vector<16x16xf32>
    %cst_9 = arith.constant dense<0.000000e+00> : vector<16x16xf32>
    %9 = tpu.matmul %2, %7, %cst_9 {dimension_numbers = #tpu.dot_dimension_numbers<[1], [0], [0], [1], [0, 0, 1, 1], [], []>} : vector<16x16xf32>, vector<16x16xf32>, vector<16x16xf32> -> vector<16x16xf32>
    %10 = arith.addf %8, %9 : vector<16x16xf32>
    %cst_10 = arith.constant dense<0.000000e+00> : vector<16x32xf32>
    %11 = tpu.matmul %10, %3, %cst_10 {dimension_numbers = #tpu.dot_dimension_numbers<[1], [0], [0], [1], [0, 0, 1, 1], [], []>} : vector<16x16xf32>, vector<16x32xf32>, vector<16x32xf32> -> vector<16x32xf32>
    %12 = vector.broadcast %4 : vector<1x32xf32> to vector<16x32xf32>
    %13 = arith.addf %11, %12 : vector<16x32xf32>
    %cst_11 = arith.constant 0.000000e+00 : f32
    %14 = vector.broadcast %cst_11 : f32 to vector<16x32xf32>
    %15 = arith.maximumf %13, %14 : vector<16x32xf32>
    %cst_12 = arith.constant dense<0.000000e+00> : vector<16x32xf32>
    %16 = tpu.matmul %2, %15, %cst_12 {dimension_numbers = #tpu.dot_dimension_numbers<[1], [0], [0], [1], [0, 0, 1, 1], [], []>} : vector<16x16xf32>, vector<16x32xf32>, vector<16x32xf32> -> vector<16x32xf32>
    %17 = arith.addf %15, %16 : vector<16x32xf32>
    %cst_13 = arith.constant dense<0.000000e+00> : vector<16x32xf32>
    %18 = tpu.matmul %2, %16, %cst_13 {dimension_numbers = #tpu.dot_dimension_numbers<[1], [0], [0], [1], [0, 0, 1, 1], [], []>} : vector<16x16xf32>, vector<16x32xf32>, vector<16x32xf32> -> vector<16x32xf32>
    %19 = arith.addf %17, %18 : vector<16x32xf32>
    %cst_14 = arith.constant dense<0.000000e+00> : vector<16x64xf32>
    %20 = tpu.matmul %19, %5, %cst_14 {dimension_numbers = #tpu.dot_dimension_numbers<[1], [0], [0], [1], [0, 0, 1, 1], [], []>} : vector<16x32xf32>, vector<32x64xf32>, vector<16x64xf32> -> vector<16x64xf32>
    %21 = vector.broadcast %6 : vector<1x64xf32> to vector<16x64xf32>
    %22 = arith.addf %20, %21 : vector<16x64xf32>
    %cst_15 = arith.constant 0.000000e+00 : f32
    %23 = vector.broadcast %cst_15 : f32 to vector<16x64xf32>
    %24 = arith.maximumf %22, %23 : vector<16x64xf32>
    %c0_16 = arith.constant 0 : index
    %c0_17 = arith.constant 0 : index
    %25 = vector.load %arg1[%c0_16, %c0_17] : memref<16x16xf32, #tpu.memory_space<vmem>>, vector<16x16xf32>
    %c48 = arith.constant 48 : index
    %c0_18 = arith.constant 0 : index
    %26 = vector.load %arg7[%c48, %c0_18] : memref<256x128xf32, #tpu.memory_space<vmem>>, vector<16x32xf32>
    %c200 = arith.constant 200 : index
    %c0_19 = arith.constant 0 : index
    %27 = vector.load %arg7[%c200, %c0_19] : memref<256x128xf32, #tpu.memory_space<vmem>>, vector<1x32xf32>
    %c128 = arith.constant 128 : index
    %c0_20 = arith.constant 0 : index
    %28 = vector.load %arg7[%c128, %c0_20] : memref<256x128xf32, #tpu.memory_space<vmem>>, vector<32x64xf32>
    %c224 = arith.constant 224 : index
    %c0_21 = arith.constant 0 : index
    %29 = vector.load %arg7[%c224, %c0_21] : memref<256x128xf32, #tpu.memory_space<vmem>>, vector<1x64xf32>
    %cst_22 = arith.constant dense<0.000000e+00> : vector<16x16xf32>
    %30 = tpu.matmul %25, %1, %cst_22 {dimension_numbers = #tpu.dot_dimension_numbers<[1], [0], [0], [1], [0, 0, 1, 1], [], []>} : vector<16x16xf32>, vector<16x16xf32>, vector<16x16xf32> -> vector<16x16xf32>
    %31 = arith.addf %1, %30 : vector<16x16xf32>
    %cst_23 = arith.constant dense<0.000000e+00> : vector<16x16xf32>
    %32 = tpu.matmul %25, %30, %cst_23 {dimension_numbers = #tpu.dot_dimension_numbers<[1], [0], [0], [1], [0, 0, 1, 1], [], []>} : vector<16x16xf32>, vector<16x16xf32>, vector<16x16xf32> -> vector<16x16xf32>
    %33 = arith.addf %31, %32 : vector<16x16xf32>
    %cst_24 = arith.constant dense<0.000000e+00> : vector<16x32xf32>
    %34 = tpu.matmul %33, %26, %cst_24 {dimension_numbers = #tpu.dot_dimension_numbers<[1], [0], [0], [1], [0, 0, 1, 1], [], []>} : vector<16x16xf32>, vector<16x32xf32>, vector<16x32xf32> -> vector<16x32xf32>
    %35 = vector.broadcast %27 : vector<1x32xf32> to vector<16x32xf32>
    %36 = arith.addf %34, %35 : vector<16x32xf32>
    %cst_25 = arith.constant 0.000000e+00 : f32
    %37 = vector.broadcast %cst_25 : f32 to vector<16x32xf32>
    %38 = arith.maximumf %36, %37 : vector<16x32xf32>
    %cst_26 = arith.constant dense<0.000000e+00> : vector<16x32xf32>
    %39 = tpu.matmul %25, %38, %cst_26 {dimension_numbers = #tpu.dot_dimension_numbers<[1], [0], [0], [1], [0, 0, 1, 1], [], []>} : vector<16x16xf32>, vector<16x32xf32>, vector<16x32xf32> -> vector<16x32xf32>
    %40 = arith.addf %38, %39 : vector<16x32xf32>
    %cst_27 = arith.constant dense<0.000000e+00> : vector<16x32xf32>
    %41 = tpu.matmul %25, %39, %cst_27 {dimension_numbers = #tpu.dot_dimension_numbers<[1], [0], [0], [1], [0, 0, 1, 1], [], []>} : vector<16x16xf32>, vector<16x32xf32>, vector<16x32xf32> -> vector<16x32xf32>
    %42 = arith.addf %40, %41 : vector<16x32xf32>
    %cst_28 = arith.constant dense<0.000000e+00> : vector<16x64xf32>
    %43 = tpu.matmul %42, %28, %cst_28 {dimension_numbers = #tpu.dot_dimension_numbers<[1], [0], [0], [1], [0, 0, 1, 1], [], []>} : vector<16x32xf32>, vector<32x64xf32>, vector<16x64xf32> -> vector<16x64xf32>
    %44 = vector.broadcast %29 : vector<1x64xf32> to vector<16x64xf32>
    %45 = arith.addf %43, %44 : vector<16x64xf32>
    %cst_29 = arith.constant 0.000000e+00 : f32
    %46 = vector.broadcast %cst_29 : f32 to vector<16x64xf32>
    %47 = arith.maximumf %45, %46 : vector<16x64xf32>
    %c0_30 = arith.constant 0 : index
    %c0_31 = arith.constant 0 : index
    %48 = vector.load %arg7[%c0_30, %c0_31] : memref<256x128xf32, #tpu.memory_space<vmem>>, vector<16x32xf32>
    %cst_32 = arith.constant dense<0.000000e+00> : vector<16x32xf32>
    %49 = tpu.matmul %0, %48, %cst_32 {dimension_numbers = #tpu.dot_dimension_numbers<[1], [0], [0], [1], [0, 0, 1, 1], [], []>} : vector<16x16xf32>, vector<16x32xf32>, vector<16x32xf32> -> vector<16x32xf32>
    %c16 = arith.constant 16 : index
    %c0_33 = arith.constant 0 : index
    %50 = vector.load %arg7[%c16, %c0_33] : memref<256x128xf32, #tpu.memory_space<vmem>>, vector<16x32xf32>
    %cst_34 = arith.constant dense<0.000000e+00> : vector<16x32xf32>
    %51 = tpu.matmul %1, %50, %cst_34 {dimension_numbers = #tpu.dot_dimension_numbers<[1], [0], [0], [1], [0, 0, 1, 1], [], []>} : vector<16x16xf32>, vector<16x32xf32>, vector<16x32xf32> -> vector<16x32xf32>
    %52 = tpu.concatenate %49, %51 in 0 : vector<16x32xf32>, vector<16x32xf32> -> vector<32x32xf32>
    %c0_35 = arith.constant 0 : index
    %c0_36 = arith.constant 0 : index
    %53 = vector.load %arg2[%c0_35, %c0_36] : memref<32x32xf32, #tpu.memory_space<vmem>>, vector<32x32xf32>
    %c64 = arith.constant 64 : index
    %c0_37 = arith.constant 0 : index
    %54 = vector.load %arg7[%c64, %c0_37] : memref<256x128xf32, #tpu.memory_space<vmem>>, vector<32x32xf32>
    %c208 = arith.constant 208 : index
    %c0_38 = arith.constant 0 : index
    %55 = vector.load %arg7[%c208, %c0_38] : memref<256x128xf32, #tpu.memory_space<vmem>>, vector<1x32xf32>
    %c160 = arith.constant 160 : index
    %c0_39 = arith.constant 0 : index
    %56 = vector.load %arg7[%c160, %c0_39] : memref<256x128xf32, #tpu.memory_space<vmem>>, vector<32x64xf32>
    %c232 = arith.constant 232 : index
    %c0_40 = arith.constant 0 : index
    %57 = vector.load %arg7[%c232, %c0_40] : memref<256x128xf32, #tpu.memory_space<vmem>>, vector<1x64xf32>
    %cst_41 = arith.constant dense<0.000000e+00> : vector<32x32xf32>
    %58 = tpu.matmul %52, %54, %cst_41 {dimension_numbers = #tpu.dot_dimension_numbers<[1], [0], [0], [1], [0, 0, 1, 1], [], []>} : vector<32x32xf32>, vector<32x32xf32>, vector<32x32xf32> -> vector<32x32xf32>
    %cst_42 = arith.constant dense<0.000000e+00> : vector<32x32xf32>
    %59 = tpu.matmul %53, %58, %cst_42 {dimension_numbers = #tpu.dot_dimension_numbers<[1], [0], [0], [1], [0, 0, 1, 1], [], []>} : vector<32x32xf32>, vector<32x32xf32>, vector<32x32xf32> -> vector<32x32xf32>
    %60 = arith.addf %58, %59 : vector<32x32xf32>
    %cst_43 = arith.constant dense<0.000000e+00> : vector<32x32xf32>
    %61 = tpu.matmul %53, %59, %cst_43 {dimension_numbers = #tpu.dot_dimension_numbers<[1], [0], [0], [1], [0, 0, 1, 1], [], []>} : vector<32x32xf32>, vector<32x32xf32>, vector<32x32xf32> -> vector<32x32xf32>
    %62 = arith.addf %60, %61 : vector<32x32xf32>
    %63 = vector.broadcast %55 : vector<1x32xf32> to vector<32x32xf32>
    %64 = arith.addf %62, %63 : vector<32x32xf32>
    %cst_44 = arith.constant 0.000000e+00 : f32
    %65 = vector.broadcast %cst_44 : f32 to vector<32x32xf32>
    %66 = arith.maximumf %64, %65 : vector<32x32xf32>
    %cst_45 = arith.constant dense<0.000000e+00> : vector<32x32xf32>
    %67 = tpu.matmul %53, %66, %cst_45 {dimension_numbers = #tpu.dot_dimension_numbers<[1], [0], [0], [1], [0, 0, 1, 1], [], []>} : vector<32x32xf32>, vector<32x32xf32>, vector<32x32xf32> -> vector<32x32xf32>
    %68 = arith.addf %66, %67 : vector<32x32xf32>
    %cst_46 = arith.constant dense<0.000000e+00> : vector<32x32xf32>
    %69 = tpu.matmul %53, %67, %cst_46 {dimension_numbers = #tpu.dot_dimension_numbers<[1], [0], [0], [1], [0, 0, 1, 1], [], []>} : vector<32x32xf32>, vector<32x32xf32>, vector<32x32xf32> -> vector<32x32xf32>
    %70 = arith.addf %68, %69 : vector<32x32xf32>
    %cst_47 = arith.constant dense<0.000000e+00> : vector<32x64xf32>
    %71 = tpu.matmul %70, %56, %cst_47 {dimension_numbers = #tpu.dot_dimension_numbers<[1], [0], [0], [1], [0, 0, 1, 1], [], []>} : vector<32x32xf32>, vector<32x64xf32>, vector<32x64xf32> -> vector<32x64xf32>
    %72 = vector.broadcast %57 : vector<1x64xf32> to vector<32x64xf32>
    %73 = arith.addf %71, %72 : vector<32x64xf32>
    %cst_48 = arith.constant 0.000000e+00 : f32
    %74 = vector.broadcast %cst_48 : f32 to vector<32x64xf32>
    %75 = arith.maximumf %73, %74 : vector<32x64xf32>
    %76 = vector.extract_strided_slice %75 {offsets = [0, 0], sizes = [16, 64], strides = [1, 1]} : vector<32x64xf32> to vector<16x64xf32>
    %77 = tpu.concatenate %24, %76 in 1 : vector<16x64xf32>, vector<16x64xf32> -> vector<16x128xf32>
    %78 = vector.extract_strided_slice %75 {offsets = [16, 0], sizes = [16, 64], strides = [1, 1]} : vector<32x64xf32> to vector<16x64xf32>
    %79 = tpu.concatenate %47, %78 in 1 : vector<16x64xf32>, vector<16x64xf32> -> vector<16x128xf32>
    %c0_49 = arith.constant 0 : index
    %c0_50 = arith.constant 0 : index
    %80 = vector.load %arg5[%c0_49, %c0_50] : memref<8x16xf32, #tpu.memory_space<vmem>>, vector<8x16xf32>
    %cst_51 = arith.constant dense<0.000000e+00> : vector<8x128xf32>
    %81 = tpu.matmul %80, %77, %cst_51 {dimension_numbers = #tpu.dot_dimension_numbers<[1], [0], [0], [1], [0, 0, 1, 1], [], []>} : vector<8x16xf32>, vector<16x128xf32>, vector<8x128xf32> -> vector<8x128xf32>
    %c0_52 = arith.constant 0 : index
    %c0_53 = arith.constant 0 : index
    %82 = vector.load %arg6[%c0_52, %c0_53] : memref<8x16xf32, #tpu.memory_space<vmem>>, vector<8x16xf32>
    %cst_54 = arith.constant dense<0.000000e+00> : vector<8x128xf32>
    %83 = tpu.matmul %82, %79, %cst_54 {dimension_numbers = #tpu.dot_dimension_numbers<[1], [0], [0], [1], [0, 0, 1, 1], [], []>} : vector<8x16xf32>, vector<16x128xf32>, vector<8x128xf32> -> vector<8x128xf32>
    %84 = arith.mulf %81, %83 : vector<8x128xf32>
    %c240 = arith.constant 240 : index
    %c0_55 = arith.constant 0 : index
    %85 = vector.load %arg7[%c240, %c0_55] : memref<256x128xf32, #tpu.memory_space<vmem>>, vector<1x128xf32>
    %cst_56 = arith.constant dense<0.000000e+00> : vector<1x8xf32>
    %86 = tpu.matmul %85, %84, %cst_56 {dimension_numbers = #tpu.dot_dimension_numbers<[1], [1], [0], [0], [0, 0, 1, 0], [], []>} : vector<1x128xf32>, vector<8x128xf32>, vector<1x8xf32> -> vector<1x8xf32>
    %c248 = arith.constant 248 : index
    %c0_57 = arith.constant 0 : index
    %87 = vector.load %arg7[%c248, %c0_57] : memref<256x128xf32, #tpu.memory_space<vmem>>, vector<1x1xf32>
    %88 = vector.broadcast %87 : vector<1x1xf32> to vector<1x8xf32>
    %89 = arith.addf %86, %88 : vector<1x8xf32>
    %90 = arith.negf %89 : vector<1x8xf32>
    %91 = math.exp %90 : vector<1x8xf32>
    %cst_58 = arith.constant 1.000000e+00 : f32
    %92 = vector.broadcast %cst_58 : f32 to vector<1x8xf32>
    %93 = arith.addf %92, %91 : vector<1x8xf32>
    %94 = arith.divf %92, %93 : vector<1x8xf32>
    %c0_59 = arith.constant 0 : index
    %c0_60 = arith.constant 0 : index
    %95 = vector.load %arg8[%c0_59, %c0_60] : memref<1x8xf32, #tpu.memory_space<vmem>>, vector<1x8xf32>
    tpu.vector_store %arg8[%c0_59, %c0_60], %94 {strides = array<i32>} : memref<1x8xf32, #tpu.memory_space<vmem>>, vector<1x8xf32>,
    return
  }
}

</mosaic_0001>

<llo_original>
// kernel: minimda_forward.1
$region0: #{minimda_forward.1}
  #allocation0 [shape = 'u32[]', space=smem, size = 0x4, offset = 0x4, fixed_abs, tag = 'smem constant byte address 0x4 - core index']
  #allocation1 [shape = 'u32[72,128]{1,0:T(1,128)}', space=vmem, size = 0x9000, scoped, tag = 'internal scratch']
  %s0 = inlined_call_operand.vmem [shape: f32[16,16], index: 0, kind: input, shape index: {}]
  %s1 = inlined_call_operand.vmem [shape: f32[16,16], index: 1, kind: input, shape index: {}]
  %s2 = inlined_call_operand.vmem [shape: f32[32,32], index: 2, kind: input, shape index: {}]
  %s3 = inlined_call_operand.vmem [shape: f32[16,16], index: 3, kind: input, shape index: {}]
  %s4 = inlined_call_operand.vmem [shape: f32[16,16], index: 4, kind: input, shape index: {}]
  %s5 = inlined_call_operand.vmem [shape: f32[8,16], index: 5, kind: input, shape index: {}]
  %s6 = inlined_call_operand.vmem [shape: f32[8,16], index: 6, kind: input, shape index: {}]
  %s7 = inlined_call_operand.vmem [shape: f32[256,128], index: 7, kind: input, shape index: {}]
  %s8 = inlined_call_operand.hbm [shape: f32[1,8], index: 8, kind: output, shape index: {}]
  %s9 = sld [smem:[#allocation0]]
  $region42: #{minimda_forward.1} parent=0
    _
  %s11 = ssub.s32 1, %s9
  %s12 = scalar_select 0, %s11, %s9
  $region1: #{minimda_forward.1} parent=0
    #allocation2 [shape = 'u8[512]{0}', space=vmem, size = 0x400, scoped, tag = 'output window, operand 0, single buffered']
    #allocation3 [shape = 's32[1]{0}', space=sflag, size = 0x4, scoped, tag = 'scoped memory for minimda_forward.1']
    %13 = vsyncpa [#allocation3], 0
    // Predicated region
    $region2: #{minimda_forward.1} parent=1 // pred_check
      _
    $region3: #{minimda_forward.1} parent=1 // pred_check_branch
      %15 = sbr.rel (0) target = $region5
    $region4: #{minimda_forward.1} parent=1 // pred_region
      _
    $region5: #{minimda_forward.1} parent=1 // pred_fallthru
      _
    // Predicated region
    $region6: #{minimda_forward.1} parent=1 // pred_check
      _
    $region7: #{minimda_forward.1} parent=1 // pred_check_branch
      %17 = sbr.rel (0) target = $region9
    $region8: #{minimda_forward.1} parent=1 // pred_region
      _
    $region9: #{minimda_forward.1} parent=1 // pred_fallthru
      _
    // Predicated region
    $region10: #{minimda_forward.1} parent=1 // pred_check
      _
    $region11: #{minimda_forward.1} parent=1 // pred_check_branch
      %19 = sbr.rel (0) target = $region13
    $region12: #{minimda_forward.1} parent=1 // pred_region
      _
    $region13: #{minimda_forward.1} parent=1 // pred_fallthru
      _
    // Predicated region
    $region14: #{minimda_forward.1} parent=1 // pred_check
      _
    $region15: #{minimda_forward.1} parent=1 // pred_check_branch
      %21 = sbr.rel (0) target = $region17
    $region16: #{minimda_forward.1} parent=1 // pred_region
      _
    $region17: #{minimda_forward.1} parent=1 // pred_fallthru
      _
    // Predicated region
    $region18: #{minimda_forward.1} parent=1 // pred_check
      _
    $region19: #{minimda_forward.1} parent=1 // pred_check_branch
      %23 = sbr.rel (0) target = $region21
    $region20: #{minimda_forward.1} parent=1 // pred_region
      _
    $region21: #{minimda_forward.1} parent=1 // pred_fallthru
      _
    // Predicated region
    $region22: #{minimda_forward.1} parent=1 // pred_check
      _
    $region23: #{minimda_forward.1} parent=1 // pred_check_branch
      %25 = sbr.rel (0) target = $region25
    $region24: #{minimda_forward.1} parent=1 // pred_region
      _
    $region25: #{minimda_forward.1} parent=1 // pred_fallthru
      _
    // Predicated region
    $region26: #{minimda_forward.1} parent=1 // pred_check
      _
    $region27: #{minimda_forward.1} parent=1 // pred_check_branch
      %27 = sbr.rel (0) target = $region29
    $region28: #{minimda_forward.1} parent=1 // pred_region
      _
    $region29: #{minimda_forward.1} parent=1 // pred_fallthru
      _
    // Predicated region
    $region30: #{minimda_forward.1} parent=1 // pred_check
      _
    $region31: #{minimda_forward.1} parent=1 // pred_check_branch
      %29 = sbr.rel (0) target = $region33
    $region32: #{minimda_forward.1} parent=1 // pred_region
      _
    $region33: #{minimda_forward.1} parent=1 // pred_fallthru
      _
    %v30 = vld [vmem:[%s3] sm:$0xff]
    %v31 = vld [vmem:[%s3 + $0x8] sm:$0xff]
    %v32 = vld [vmem:[%s4] sm:$0xff]
    %v33 = vld [vmem:[%s4 + $0x8] sm:$0xff]
    %v34 = vld [vmem:[%s0] sm:$0xff]
    %v35 = vld [vmem:[%s0 + $0x8] sm:$0xff]
    %v36 = vld [vmem:[%s7 + $0x20] sm:$0xff]
    %v37 = vld [vmem:[%s7 + $0x28] sm:$0xff]
    %v38 = vld [vmem:[%s7 + $0xc0] sm:$0x1]
    %v39 = vld [vmem:[%s7 + $0x60] sm:$0xff]
    %v40 = vld [vmem:[%s7 + $0x68] sm:$0xff]
    %v41 = vld [vmem:[%s7 + $0x70] sm:$0xff]
    %v42 = vld [vmem:[%s7 + $0x78] sm:$0xff]
    %v43 = vld [vmem:[%s7 + $0xd8] sm:$0x1]
    %vm44 = vcmask 130048
    %v46 = vsel %vm44, %v34, 0
    %v49 = vsel %vm44, %v35, 0
    %51 = vmatpush.msra.mxu0 0.0
    %52 = vmatpush.msra.mxu0 0.0
    %53 = vmatpush.msra.mxu0 0.0
    %54 = vmatpush.msra.mxu0 0.0
    %55 = vmatpush.msra.mxu0 0.0
    %56 = vmatpush.msra.mxu0 0.0
    %57 = vmatpush.msra.mxu0 0.0
    %58 = vmatpush.msra.mxu0 0.0
    %59 = vmatpush.msra.mxu0 0.0
    %60 = vmatpush.msra.mxu0 0.0
    %61 = vmatpush.msra.mxu0 0.0
    %62 = vmatpush.msra.mxu0 0.0
    %63 = vmatpush.msra.mxu0 0.0
    %64 = vmatpush.msra.mxu0 0.0
    %65 = vmatpush.msra.mxu0 %v31
    %66 = vmatpush.msra.mxu0 %v30
    %67 = vmatmul.f32.gmra.mxu0 %v46
    %v68 = vpop.f32.mrf.mxu0
    %v69 = vadd.f32 0.0, %v68
    %70 = vmatmul.f32.gmra.mxu0 %v49
    %v71 = vpop.f32.mrf.mxu0
    %v72 = vadd.f32 0.0, %v71
    %73 = vdwg.mxu0
    %v74 = vadd.f32 %v30, %v69
    %v75 = vadd.f32 %v31, %v72
    %76 = vmatpush.msra.mxu0 0.0
    %77 = vmatpush.msra.mxu0 0.0
    %78 = vmatpush.msra.mxu0 0.0
    %79 = vmatpush.msra.mxu0 0.0
    %80 = vmatpush.msra.mxu0 0.0
    %81 = vmatpush.msra.mxu0 0.0
    %82 = vmatpush.msra.mxu0 0.0
    %83 = vmatpush.msra.mxu0 0.0
    %84 = vmatpush.msra.mxu0 0.0
    %85 = vmatpush.msra.mxu0 0.0
    %86 = vmatpush.msra.mxu0 0.0
    %87 = vmatpush.msra.mxu0 0.0
    %88 = vmatpush.msra.mxu0 0.0
    %89 = vmatpush.msra.mxu0 0.0
    %90 = vmatpush.msra.mxu0 %v72
    %91 = vmatpush.msra.mxu0 %v69
    %92 = vmatmul.f32.gmra.mxu0 %v46
    %v93 = vpop.f32.mrf.mxu0
    %v94 = vadd.f32 0.0, %v93
    %95 = vmatmul.f32.gmra.mxu0 %v49
    %v96 = vpop.f32.mrf.mxu0
    %v97 = vadd.f32 0.0, %v96
    %98 = vdwg.mxu0
    %v99 = vadd.f32 %v74, %v94
    %v100 = vadd.f32 %v75, %v97
    %v101 = vperm.slane %v38, 0
    %v103 = vsel %vm44, %v99, 0
    %v106 = vsel %vm44, %v100, 0
    %108 = vmatpush.msra.mxu0 0.0
    %109 = vmatpush.msra.mxu0 0.0
    %110 = vmatpush.msra.mxu0 0.0
    %111 = vmatpush.msra.mxu0 0.0
    %112 = vmatpush.msra.mxu0 0.0
    %113 = vmatpush.msra.mxu0 0.0
    %114 = vmatpush.msra.mxu0 0.0
    %115 = vmatpush.msra.mxu0 0.0
    %116 = vmatpush.msra.mxu0 0.0
    %117 = vmatpush.msra.mxu0 0.0
    %118 = vmatpush.msra.mxu0 0.0
    %119 = vmatpush.msra.mxu0 0.0
    %120 = vmatpush.msra.mxu0 0.0
    %121 = vmatpush.msra.mxu0 0.0
    %122 = vmatpush.msra.mxu0 %v37
    %123 = vmatpush.msra.mxu0 %v36
    %124 = vmatmul.f32.gmra.mxu0 %v103
    %v125 = vpop.f32.mrf.mxu0
    %v126 = vadd.f32 %v101, %v125
    %127 = vmatmul.f32.gmra.mxu0 %v106
    %v128 = vpop.f32.mrf.mxu0
    %v129 = vadd.f32 %v101, %v128
    %130 = vdwg.mxu0
    %v131 = vmax.f32 %v126, 0.0
    %v132 = vmax.f32 %v129, 0.0
    %133 = vmatpush.msra.mxu0 0.0
    %134 = vmatpush.msra.mxu0 0.0
    %135 = vmatpush.msra.mxu0 0.0
    %136 = vmatpush.msra.mxu0 0.0
    %137 = vmatpush.msra.mxu0 0.0
    %138 = vmatpush.msra.mxu0 0.0
    %139 = vmatpush.msra.mxu0 0.0
    %140 = vmatpush.msra.mxu0 0.0
    %141 = vmatpush.msra.mxu0 0.0
    %142 = vmatpush.msra.mxu0 0.0
    %143 = vmatpush.msra.mxu0 0.0
    %144 = vmatpush.msra.mxu0 0.0
    %145 = vmatpush.msra.mxu0 0.0
    %146 = vmatpush.msra.mxu0 0.0
    %147 = vmatpush.msra.mxu0 %v132
    %148 = vmatpush.msra.mxu0 %v131
    %149 = vmatmul.f32.gmra.mxu0 %v46
    %v150 = vpop.f32.mrf.mxu0
    %v151 = vadd.f32 0.0, %v150
    %152 = vmatmul.f32.gmra.mxu0 %v49
    %v153 = vpop.f32.mrf.mxu0
    %v154 = vadd.f32 0.0, %v153
    %155 = vdwg.mxu0
    %v156 = vadd.f32 %v131, %v151
    %v157 = vadd.f32 %v132, %v154
    %158 = vmatpush.msra.mxu0 0.0
    %159 = vmatpush.msra.mxu0 0.0
    %160 = vmatpush.msra.mxu0 0.0
    %161 = vmatpush.msra.mxu0 0.0
    %162 = vmatpush.msra.mxu0 0.0
    %163 = vmatpush.msra.mxu0 0.0
    %164 = vmatpush.msra.mxu0 0.0
    %165 = vmatpush.msra.mxu0 0.0
    %166 = vmatpush.msra.mxu0 0.0
    %167 = vmatpush.msra.mxu0 0.0
    %168 = vmatpush.msra.mxu0 0.0
    %169 = vmatpush.msra.mxu0 0.0
    %170 = vmatpush.msra.mxu0 0.0
    %171 = vmatpush.msra.mxu0 0.0
    %172 = vmatpush.msra.mxu0 %v154
    %173 = vmatpush.msra.mxu0 %v151
    %174 = vmatmul.f32.gmra.mxu0 %v46
    %v175 = vpop.f32.mrf.mxu0
    %v176 = vadd.f32 0.0, %v175
    %177 = vmatmul.f32.gmra.mxu0 %v49
    %v178 = vpop.f32.mrf.mxu0
    %v179 = vadd.f32 0.0, %v178
    %180 = vdwg.mxu0
    %v181 = vadd.f32 %v156, %v176
    %v182 = vadd.f32 %v157, %v179
    %v183 = vperm.slane %v43, 0
    %vm184 = vcmask 261120
    %v186 = vsel %vm184, %v181, 0
    %v189 = vsel %vm184, %v182, 0
    %191 = vmatpush.msra.mxu0 0.0
    %192 = vmatpush.msra.mxu0 0.0
    %193 = vmatpush.msra.mxu0 0.0
    %194 = vmatpush.msra.mxu0 0.0
    %195 = vmatpush.msra.mxu0 0.0
    %196 = vmatpush.msra.mxu0 0.0
    %197 = vmatpush.msra.mxu0 0.0
    %198 = vmatpush.msra.mxu0 0.0
    %199 = vmatpush.msra.mxu0 0.0
    %200 = vmatpush.msra.mxu0 0.0
    %201 = vmatpush.msra.mxu0 0.0
    %202 = vmatpush.msra.mxu0 0.0
    %203 = vmatpush.msra.mxu0 %v42
    %204 = vmatpush.msra.mxu0 %v41
    %205 = vmatpush.msra.mxu0 %v40
    %206 = vmatpush.msra.mxu0 %v39
    %207 = vmatmul.f32.gmra.mxu0 %v186
    %v208 = vpop.f32.mrf.mxu0
    %v209 = vadd.f32 %v183, %v208
    %210 = vmatmul.f32.gmra.mxu0 %v189
    %v211 = vpop.f32.mrf.mxu0
    %v212 = vadd.f32 %v183, %v211
    %213 = vdwg.mxu0
    %v214 = vmax.f32 %v209, 0.0
    %v215 = vmax.f32 %v212, 0.0
    %v216 = vld [vmem:[%s1] sm:$0xff]
    %v217 = vld [vmem:[%s1 + $0x8] sm:$0xff]
    %v218 = vld [vmem:[%s7 + $0x30] sm:$0xff]
    %v219 = vld [vmem:[%s7 + $0x38] sm:$0xff]
    %v220 = vld [vmem:[%s7 + $0xc8] sm:$0x1]
    %v221 = vld [vmem:[%s7 + $0x80] sm:$0xff]
    %v222 = vld [vmem:[%s7 + $0x88] sm:$0xff]
    %v223 = vld [vmem:[%s7 + $0x90] sm:$0xff]
    %v224 = vld [vmem:[%s7 + $0x98] sm:$0xff]
    %v225 = vld [vmem:[%s7 + $0xe0] sm:$0x1]
    %v227 = vsel %vm44, %v216, 0
    %v230 = vsel %vm44, %v217, 0
    %232 = vmatpush.msra.mxu0 0.0
    %233 = vmatpush.msra.mxu0 0.0
    %234 = vmatpush.msra.mxu0 0.0
    %235 = vmatpush.msra.mxu0 0.0
    %236 = vmatpush.msra.mxu0 0.0
    %237 = vmatpush.msra.mxu0 0.0
    %238 = vmatpush.msra.mxu0 0.0
    %239 = vmatpush.msra.mxu0 0.0
    %240 = vmatpush.msra.mxu0 0.0
    %241 = vmatpush.msra.mxu0 0.0
    %242 = vmatpush.msra.mxu0 0.0
    %243 = vmatpush.msra.mxu0 0.0
    %244 = vmatpush.msra.mxu0 0.0
    %245 = vmatpush.msra.mxu0 0.0
    %246 = vmatpush.msra.mxu0 %v33
    %247 = vmatpush.msra.mxu0 %v32
    %248 = vmatmul.f32.gmra.mxu0 %v227
    %v249 = vpop.f32.mrf.mxu0
    %v250 = vadd.f32 0.0, %v249
    %251 = vmatmul.f32.gmra.mxu0 %v230
    %v252 = vpop.f32.mrf.mxu0
    %v253 = vadd.f32 0.0, %v252
    %254 = vdwg.mxu0
    %v255 = vadd.f32 %v32, %v250
    %v256 = vadd.f32 %v33, %v253
    %257 = vmatpush.msra.mxu0 0.0
    %258 = vmatpush.msra.mxu0 0.0
    %259 = vmatpush.msra.mxu0 0.0
    %260 = vmatpush.msra.mxu0 0.0
    %261 = vmatpush.msra.mxu0 0.0
    %262 = vmatpush.msra.mxu0 0.0
    %263 = vmatpush.msra.mxu0 0.0
    %264 = vmatpush.msra.mxu0 0.0
    %265 = vmatpush.msra.mxu0 0.0
    %266 = vmatpush.msra.mxu0 0.0
    %267 = vmatpush.msra.mxu0 0.0
    %268 = vmatpush.msra.mxu0 0.0
    %269 = vmatpush.msra.mxu0 0.0
    %270 = vmatpush.msra.mxu0 0.0
    %271 = vmatpush.msra.mxu0 %v253
    %272 = vmatpush.msra.mxu0 %v250
    %273 = vmatmul.f32.gmra.mxu0 %v227
    %v274 = vpop.f32.mrf.mxu0
    %v275 = vadd.f32 0.0, %v274
    %276 = vmatmul.f32.gmra.mxu0 %v230
    %v277 = vpop.f32.mrf.mxu0
    %v278 = vadd.f32 0.0, %v277
    %279 = vdwg.mxu0
    %v280 = vadd.f32 %v255, %v275
    %v281 = vadd.f32 %v256, %v278
    %v282 = vperm.slane %v220, 0
    %v284 = vsel %vm44, %v280, 0
    %v287 = vsel %vm44, %v281, 0
    %289 = vmatpush.msra.mxu0 0.0
    %290 = vmatpush.msra.mxu0 0.0
    %291 = vmatpush.msra.mxu0 0.0
    %292 = vmatpush.msra.mxu0 0.0
    %293 = vmatpush.msra.mxu0 0.0
    %294 = vmatpush.msra.mxu0 0.0
    %295 = vmatpush.msra.mxu0 0.0
    %296 = vmatpush.msra.mxu0 0.0
    %297 = vmatpush.msra.mxu0 0.0
    %298 = vmatpush.msra.mxu0 0.0
    %299 = vmatpush.msra.mxu0 0.0
    %300 = vmatpush.msra.mxu0 0.0
    %301 = vmatpush.msra.mxu0 0.0
    %302 = vmatpush.msra.mxu0 0.0
    %303 = vmatpush.msra.mxu0 %v219
    %304 = vmatpush.msra.mxu0 %v218
    %305 = vmatmul.f32.gmra.mxu0 %v284
    %v306 = vpop.f32.mrf.mxu0
    %v307 = vadd.f32 %v282, %v306
    %308 = vmatmul.f32.gmra.mxu0 %v287
    %v309 = vpop.f32.mrf.mxu0
    %v310 = vadd.f32 %v282, %v309
    %311 = vdwg.mxu0
    %v312 = vmax.f32 %v307, 0.0
    %v313 = vmax.f32 %v310, 0.0
    %314 = vmatpush.msra.mxu0 0.0
    %315 = vmatpush.msra.mxu0 0.0
    %316 = vmatpush.msra.mxu0 0.0
    %317 = vmatpush.msra.mxu0 0.0
    %318 = vmatpush.msra.mxu0 0.0
    %319 = vmatpush.msra.mxu0 0.0
    %320 = vmatpush.msra.mxu0 0.0
    %321 = vmatpush.msra.mxu0 0.0
    %322 = vmatpush.msra.mxu0 0.0
    %323 = vmatpush.msra.mxu0 0.0
    %324 = vmatpush.msra.mxu0 0.0
    %325 = vmatpush.msra.mxu0 0.0
    %326 = vmatpush.msra.mxu0 0.0
    %327 = vmatpush.msra.mxu0 0.0
    %328 = vmatpush.msra.mxu0 %v313
    %329 = vmatpush.msra.mxu0 %v312
    %330 = vmatmul.f32.gmra.mxu0 %v227
    %v331 = vpop.f32.mrf.mxu0
    %v332 = vadd.f32 0.0, %v331
    %333 = vmatmul.f32.gmra.mxu0 %v230
    %v334 = vpop.f32.mrf.mxu0
    %v335 = vadd.f32 0.0, %v334
    %336 = vdwg.mxu0
    %v337 = vadd.f32 %v312, %v332
    %v338 = vadd.f32 %v313, %v335
    %339 = vmatpush.msra.mxu0 0.0
    %340 = vmatpush.msra.mxu0 0.0
    %341 = vmatpush.msra.mxu0 0.0
    %342 = vmatpush.msra.mxu0 0.0
    %343 = vmatpush.msra.mxu0 0.0
    %344 = vmatpush.msra.mxu0 0.0
    %345 = vmatpush.msra.mxu0 0.0
    %346 = vmatpush.msra.mxu0 0.0
    %347 = vmatpush.msra.mxu0 0.0
    %348 = vmatpush.msra.mxu0 0.0
    %349 = vmatpush.msra.mxu0 0.0
    %350 = vmatpush.msra.mxu0 0.0
    %351 = vmatpush.msra.mxu0 0.0
    %352 = vmatpush.msra.mxu0 0.0
    %353 = vmatpush.msra.mxu0 %v335
    %354 = vmatpush.msra.mxu0 %v332
    %355 = vmatmul.f32.gmra.mxu0 %v227
    %v356 = vpop.f32.mrf.mxu0
    %v357 = vadd.f32 0.0, %v356
    %358 = vmatmul.f32.gmra.mxu0 %v230
    %v359 = vpop.f32.mrf.mxu0
    %v360 = vadd.f32 0.0, %v359
    %361 = vdwg.mxu0
    %v362 = vadd.f32 %v337, %v357
    %v363 = vadd.f32 %v338, %v360
    %v364 = vperm.slane %v225, 0
    %v366 = vsel %vm184, %v362, 0
    %v369 = vsel %vm184, %v363, 0
    %371 = vmatpush.msra.mxu0 0.0
    %372 = vmatpush.msra.mxu0 0.0
    %373 = vmatpush.msra.mxu0 0.0
    %374 = vmatpush.msra.mxu0 0.0
    %375 = vmatpush.msra.mxu0 0.0
    %376 = vmatpush.msra.mxu0 0.0
    %377 = vmatpush.msra.mxu0 0.0
    %378 = vmatpush.msra.mxu0 0.0
    %379 = vmatpush.msra.mxu0 0.0
    %380 = vmatpush.msra.mxu0 0.0
    %381 = vmatpush.msra.mxu0 0.0
    %382 = vmatpush.msra.mxu0 0.0
    %383 = vmatpush.msra.mxu0 %v224
    %384 = vmatpush.msra.mxu0 %v223
    %385 = vmatpush.msra.mxu0 %v222
    %386 = vmatpush.msra.mxu0 %v221
    %387 = vmatmul.f32.gmra.mxu0 %v366
    %v388 = vpop.f32.mrf.mxu0
    %v389 = vadd.f32 %v364, %v388
    %390 = vmatmul.f32.gmra.mxu0 %v369
    %v391 = vpop.f32.mrf.mxu0
    %v392 = vadd.f32 %v364, %v391
    %393 = vdwg.mxu0
    %v394 = vmax.f32 %v389, 0.0
    %v395 = vmax.f32 %v392, 0.0
    %v396 = vld [vmem:[%s7] sm:$0xff]
    %v397 = vld [vmem:[%s7 + $0x8] sm:$0xff]
    %v399 = vsel %vm44, %v30, 0
    %v402 = vsel %vm44, %v31, 0
    %404 = vmatpush.msra.mxu0 0.0
    %405 = vmatpush.msra.mxu0 0.0
    %406 = vmatpush.msra.mxu0 0.0
    %407 = vmatpush.msra.mxu0 0.0
    %408 = vmatpush.msra.mxu0 0.0
    %409 = vmatpush.msra.mxu0 0.0
    %410 = vmatpush.msra.mxu0 0.0
    %411 = vmatpush.msra.mxu0 0.0
    %412 = vmatpush.msra.mxu0 0.0
    %413 = vmatpush.msra.mxu0 0.0
    %414 = vmatpush.msra.mxu0 0.0
    %415 = vmatpush.msra.mxu0 0.0
    %416 = vmatpush.msra.mxu0 0.0
    %417 = vmatpush.msra.mxu0 0.0
    %418 = vmatpush.msra.mxu0 %v397
    %419 = vmatpush.msra.mxu0 %v396
    %420 = vmatmul.f32.gmra.mxu0 %v399
    %v421 = vpop.f32.mrf.mxu0
    %v422 = vadd.f32 0.0, %v421
    %423 = vmatmul.f32.gmra.mxu0 %v402
    %v424 = vpop.f32.mrf.mxu0
    %v425 = vadd.f32 0.0, %v424
    %426 = vdwg.mxu0
    %v427 = vld [vmem:[%s7 + $0x10] sm:$0xff]
    %v428 = vld [vmem:[%s7 + $0x18] sm:$0xff]
    %v430 = vsel %vm44, %v32, 0
    %v433 = vsel %vm44, %v33, 0
    %435 = vmatpush.msra.mxu0 0.0
    %436 = vmatpush.msra.mxu0 0.0
    %437 = vmatpush.msra.mxu0 0.0
    %438 = vmatpush.msra.mxu0 0.0
    %439 = vmatpush.msra.mxu0 0.0
    %440 = vmatpush.msra.mxu0 0.0
    %441 = vmatpush.msra.mxu0 0.0
    %442 = vmatpush.msra.mxu0 0.0
    %443 = vmatpush.msra.mxu0 0.0
    %444 = vmatpush.msra.mxu0 0.0
    %445 = vmatpush.msra.mxu0 0.0
    %446 = vmatpush.msra.mxu0 0.0
    %447 = vmatpush.msra.mxu0 0.0
    %448 = vmatpush.msra.mxu0 0.0
    %449 = vmatpush.msra.mxu0 %v428
    %450 = vmatpush.msra.mxu0 %v427
    %451 = vmatmul.f32.gmra.mxu0 %v430
    %v452 = vpop.f32.mrf.mxu0
    %v453 = vadd.f32 0.0, %v452
    %454 = vmatmul.f32.gmra.mxu0 %v433
    %v455 = vpop.f32.mrf.mxu0
    %v456 = vadd.f32 0.0, %v455
    %457 = vdwg.mxu0
    %v458 = vld [vmem:[%s2] sm:$0xff]
    %v459 = vld [vmem:[%s2 + $0x8] sm:$0xff]
    %v460 = vld [vmem:[%s2 + $0x10] sm:$0xff]
    %v461 = vld [vmem:[%s2 + $0x18] sm:$0xff]
    %v462 = vld [vmem:[%s7 + $0x40] sm:$0xff]
    %v463 = vld [vmem:[%s7 + $0x48] sm:$0xff]
    %v464 = vld [vmem:[%s7 + $0x50] sm:$0xff]
    %v465 = vld [vmem:[%s7 + $0x58] sm:$0xff]
    %v466 = vld [vmem:[%s7 + $0xd0] sm:$0x1]
    %v467 = vld [vmem:[%s7 + $0xa0] sm:$0xff]
    %v468 = vld [vmem:[%s7 + $0xa8] sm:$0xff]
    %v469 = vld [vmem:[%s7 + $0xb0] sm:$0xff]
    %v470 = vld [vmem:[%s7 + $0xb8] sm:$0xff]
    %v471 = vld [vmem:[%s7 + $0xe8] sm:$0x1]
    %v473 = vsel %vm184, %v422, 0
    %v476 = vsel %vm184, %v425, 0
    %v479 = vsel %vm184, %v453, 0
    %v482 = vsel %vm184, %v456, 0
    %484 = vmatpush.msra.mxu0 0.0
    %485 = vmatpush.msra.mxu0 0.0
    %486 = vmatpush.msra.mxu0 0.0
    %487 = vmatpush.msra.mxu0 0.0
    %488 = vmatpush.msra.mxu0 0.0
    %489 = vmatpush.msra.mxu0 0.0
    %490 = vmatpush.msra.mxu0 0.0
    %491 = vmatpush.msra.mxu0 0.0
    %492 = vmatpush.msra.mxu0 0.0
    %493 = vmatpush.msra.mxu0 0.0
    %494 = vmatpush.msra.mxu0 0.0
    %495 = vmatpush.msra.mxu0 0.0
    %496 = vmatpush.msra.mxu0 %v465
    %497 = vmatpush.msra.mxu0 %v464
    %498 = vmatpush.msra.mxu0 %v463
    %499 = vmatpush.msra.mxu0 %v462
    %500 = vmatmul.f32.gmra.mxu0 %v473
    %v501 = vpop.f32.mrf.mxu0
    %v502 = vadd.f32 0.0, %v501
    %503 = vmatmul.f32.gmra.mxu0 %v476
    %v504 = vpop.f32.mrf.mxu0
    %v505 = vadd.f32 0.0, %v504
    %506 = vmatmul.f32.gmra.mxu0 %v479
    %v507 = vpop.f32.mrf.mxu0
    %v508 = vadd.f32 0.0, %v507
    %509 = vmatmul.f32.gmra.mxu0 %v482
    %v510 = vpop.f32.mrf.mxu0
    %v511 = vadd.f32 0.0, %v510
    %512 = vdwg.mxu0
    %v514 = vsel %vm184, %v458, 0
    %v517 = vsel %vm184, %v459, 0
    %v520 = vsel %vm184, %v460, 0
    %v523 = vsel %vm184, %v461, 0
    %525 = vmatpush.msra.mxu0 0.0
    %526 = vmatpush.msra.mxu0 0.0
    %527 = vmatpush.msra.mxu0 0.0
    %528 = vmatpush.msra.mxu0 0.0
    %529 = vmatpush.msra.mxu0 0.0
    %530 = vmatpush.msra.mxu0 0.0
    %531 = vmatpush.msra.mxu0 0.0
    %532 = vmatpush.msra.mxu0 0.0
    %533 = vmatpush.msra.mxu0 0.0
    %534 = vmatpush.msra.mxu0 0.0
    %535 = vmatpush.msra.mxu0 0.0
    %536 = vmatpush.msra.mxu0 0.0
    %537 = vmatpush.msra.mxu0 %v511
    %538 = vmatpush.msra.mxu0 %v508
    %539 = vmatpush.msra.mxu0 %v505
    %540 = vmatpush.msra.mxu0 %v502
    %541 = vmatmul.f32.gmra.mxu0 %v514
    %v542 = vpop.f32.mrf.mxu0
    %v543 = vadd.f32 0.0, %v542
    %544 = vmatmul.f32.gmra.mxu0 %v517
    %v545 = vpop.f32.mrf.mxu0
    %v546 = vadd.f32 0.0, %v545
    %547 = vmatmul.f32.gmra.mxu0 %v520
    %v548 = vpop.f32.mrf.mxu0
    %v549 = vadd.f32 0.0, %v548
    %550 = vmatmul.f32.gmra.mxu0 %v523
    %v551 = vpop.f32.mrf.mxu0
    %v552 = vadd.f32 0.0, %v551
    %553 = vdwg.mxu0
    %v554 = vadd.f32 %v502, %v543
    %v555 = vadd.f32 %v505, %v546
    %v556 = vadd.f32 %v508, %v549
    %v557 = vadd.f32 %v511, %v552
    %558 = vmatpush.msra.mxu0 0.0
    %559 = vmatpush.msra.mxu0 0.0
    %560 = vmatpush.msra.mxu0 0.0
    %561 = vmatpush.msra.mxu0 0.0
    %562 = vmatpush.msra.mxu0 0.0
    %563 = vmatpush.msra.mxu0 0.0
    %564 = vmatpush.msra.mxu0 0.0
    %565 = vmatpush.msra.mxu0 0.0
    %566 = vmatpush.msra.mxu0 0.0
    %567 = vmatpush.msra.mxu0 0.0
    %568 = vmatpush.msra.mxu0 0.0
    %569 = vmatpush.msra.mxu0 0.0
    %570 = vmatpush.msra.mxu0 %v552
    %571 = vmatpush.msra.mxu0 %v549
    %572 = vmatpush.msra.mxu0 %v546
    %573 = vmatpush.msra.mxu0 %v543
    %574 = vmatmul.f32.gmra.mxu0 %v514
    %v575 = vpop.f32.mrf.mxu0
    %v576 = vadd.f32 0.0, %v575
    %577 = vmatmul.f32.gmra.mxu0 %v517
    %v578 = vpop.f32.mrf.mxu0
    %v579 = vadd.f32 0.0, %v578
    %580 = vmatmul.f32.gmra.mxu0 %v520
    %v581 = vpop.f32.mrf.mxu0
    %v582 = vadd.f32 0.0, %v581
    %583 = vmatmul.f32.gmra.mxu0 %v523
    %v584 = vpop.f32.mrf.mxu0
    %v585 = vadd.f32 0.0, %v584
    %586 = vdwg.mxu0
    %v587 = vadd.f32 %v554, %v576
    %v588 = vadd.f32 %v555, %v579
    %v589 = vadd.f32 %v556, %v582
    %v590 = vadd.f32 %v557, %v585
    %v591 = vperm.slane %v466, 0
    %v592 = vadd.f32 %v587, %v591
    %v593 = vadd.f32 %v588, %v591
    %v594 = vadd.f32 %v589, %v591
    %v595 = vadd.f32 %v590, %v591
    %v596 = vmax.f32 %v592, 0.0
    %v597 = vmax.f32 %v593, 0.0
    %v598 = vmax.f32 %v594, 0.0
    %v599 = vmax.f32 %v595, 0.0
    %600 = vmatpush.msra.mxu0 0.0
    %601 = vmatpush.msra.mxu0 0.0
    %602 = vmatpush.msra.mxu0 0.0
    %603 = vmatpush.msra.mxu0 0.0
    %604 = vmatpush.msra.mxu0 0.0
    %605 = vmatpush.msra.mxu0 0.0
    %606 = vmatpush.msra.mxu0 0.0
    %607 = vmatpush.msra.mxu0 0.0
    %608 = vmatpush.msra.mxu0 0.0
    %609 = vmatpush.msra.mxu0 0.0
    %610 = vmatpush.msra.mxu0 0.0
    %611 = vmatpush.msra.mxu0 0.0
    %612 = vmatpush.msra.mxu0 %v599
    %613 = vmatpush.msra.mxu0 %v598
    %614 = vmatpush.msra.mxu0 %v597
    %615 = vmatpush.msra.mxu0 %v596
    %616 = vmatmul.f32.gmra.mxu0 %v514
    %v617 = vpop.f32.mrf.mxu0
    %v618 = vadd.f32 0.0, %v617
    %619 = vmatmul.f32.gmra.mxu0 %v517
    %v620 = vpop.f32.mrf.mxu0
    %v621 = vadd.f32 0.0, %v620
    %622 = vmatmul.f32.gmra.mxu0 %v520
    %v623 = vpop.f32.mrf.mxu0
    %v624 = vadd.f32 0.0, %v623
    %625 = vmatmul.f32.gmra.mxu0 %v523
    %v626 = vpop.f32.mrf.mxu0
    %v627 = vadd.f32 0.0, %v626
    %628 = vdwg.mxu0
    %v629 = vadd.f32 %v596, %v618
    %v630 = vadd.f32 %v597, %v621
    %v631 = vadd.f32 %v598, %v624
    %v632 = vadd.f32 %v599, %v627
    %633 = vmatpush.msra.mxu0 0.0
    %634 = vmatpush.msra.mxu0 0.0
    %635 = vmatpush.msra.mxu0 0.0
    %636 = vmatpush.msra.mxu0 0.0
    %637 = vmatpush.msra.mxu0 0.0
    %638 = vmatpush.msra.mxu0 0.0
    %639 = vmatpush.msra.mxu0 0.0
    %640 = vmatpush.msra.mxu0 0.0
    %641 = vmatpush.msra.mxu0 0.0
    %642 = vmatpush.msra.mxu0 0.0
    %643 = vmatpush.msra.mxu0 0.0
    %644 = vmatpush.msra.mxu0 0.0
    %645 = vmatpush.msra.mxu0 %v627
    %646 = vmatpush.msra.mxu0 %v624
    %647 = vmatpush.msra.mxu0 %v621
    %648 = vmatpush.msra.mxu0 %v618
    %649 = vmatmul.f32.gmra.mxu0 %v514
    %v650 = vpop.f32.mrf.mxu0
    %v651 = vadd.f32 0.0, %v650
    %652 = vmatmul.f32.gmra.mxu0 %v517
    %v653 = vpop.f32.mrf.mxu0
    %v654 = vadd.f32 0.0, %v653
    %655 = vmatmul.f32.gmra.mxu0 %v520
    %v656 = vpop.f32.mrf.mxu0
    %v657 = vadd.f32 0.0, %v656
    %658 = vmatmul.f32.gmra.mxu0 %v523
    %v659 = vpop.f32.mrf.mxu0
    %v660 = vadd.f32 0.0, %v659
    %661 = vdwg.mxu0
    %v662 = vadd.f32 %v629, %v651
    %v663 = vadd.f32 %v630, %v654
    %v664 = vadd.f32 %v631, %v657
    %v665 = vadd.f32 %v632, %v660
    %v666 = vperm.slane %v471, 0
    %v668 = vsel %vm184, %v662, 0
    %v671 = vsel %vm184, %v663, 0
    %v674 = vsel %vm184, %v664, 0
    %v677 = vsel %vm184, %v665, 0
    %679 = vmatpush.msra.mxu0 0.0
    %680 = vmatpush.msra.mxu0 0.0
    %681 = vmatpush.msra.mxu0 0.0
    %682 = vmatpush.msra.mxu0 0.0
    %683 = vmatpush.msra.mxu0 0.0
    %684 = vmatpush.msra.mxu0 0.0
    %685 = vmatpush.msra.mxu0 0.0
    %686 = vmatpush.msra.mxu0 0.0
    %687 = vmatpush.msra.mxu0 0.0
    %688 = vmatpush.msra.mxu0 0.0
    %689 = vmatpush.msra.mxu0 0.0
    %690 = vmatpush.msra.mxu0 0.0
    %691 = vmatpush.msra.mxu0 %v470
    %692 = vmatpush.msra.mxu0 %v469
    %693 = vmatpush.msra.mxu0 %v468
    %694 = vmatpush.msra.mxu0 %v467
    %695 = vmatmul.f32.gmra.mxu0 %v668
    %v696 = vpop.f32.mrf.mxu0
    %v697 = vadd.f32 %v666, %v696
    %698 = vmatmul.f32.gmra.mxu0 %v671
    %v699 = vpop.f32.mrf.mxu0
    %v700 = vadd.f32 %v666, %v699
    %701 = vmatmul.f32.gmra.mxu0 %v674
    %v702 = vpop.f32.mrf.mxu0
    %v703 = vadd.f32 %v666, %v702
    %704 = vmatmul.f32.gmra.mxu0 %v677
    %v705 = vpop.f32.mrf.mxu0
    %v706 = vadd.f32 %v666, %v705
    %707 = vdwg.mxu0
    %v708 = vmax.f32 %v697, 0.0
    %v709 = vmax.f32 %v700, 0.0
    %v710 = vmax.f32 %v703, 0.0
    %v711 = vmax.f32 %v706, 0.0
    %714 = vrot.lane.b32.xlu0 %v708, 64
    %v715 = vpop.permute.xlu0 %714
    %716 = vrot.lane.b32.xlu0 %v709, 64
    %v717 = vpop.permute.xlu0 %716
    %vm720 = vcmask 523264
    %v721 = vsel %vm720, %v214, %v715
    %v722 = vsel %vm720, %v215, %v717
    %725 = vrot.lane.b32.xlu0 %v710, 64
    %v726 = vpop.permute.xlu0 %725
    %727 = vrot.lane.b32.xlu0 %v711, 64
    %v728 = vpop.permute.xlu0 %727
    %v731 = vsel %vm720, %v394, %v726
    %v732 = vsel %vm720, %v395, %v728
    %v733 = vld [vmem:[%s5] sm:$0xff]
    %v735 = vsel %vm44, %v733, 0
    %737 = vmatpush.msra.mxu0 0.0
    %738 = vmatpush.msra.mxu0 0.0
    %739 = vmatpush.msra.mxu0 0.0
    %740 = vmatpush.msra.mxu0 0.0
    %741 = vmatpush.msra.mxu0 0.0
    %742 = vmatpush.msra.mxu0 0.0
    %743 = vmatpush.msra.mxu0 0.0
    %744 = vmatpush.msra.mxu0 0.0
    %745 = vmatpush.msra.mxu0 0.0
    %746 = vmatpush.msra.mxu0 0.0
    %747 = vmatpush.msra.mxu0 0.0
    %748 = vmatpush.msra.mxu0 0.0
    %749 = vmatpush.msra.mxu0 0.0
    %750 = vmatpush.msra.mxu0 0.0
    %751 = vmatpush.msra.mxu0 %v722
    %752 = vmatpush.msra.mxu0 %v721
    %753 = vmatmul.f32.gmra.mxu0 %v735
    %v754 = vpop.f32.mrf.mxu0
    %v755 = vadd.f32 0.0, %v754
    %756 = vdwg.mxu0
    %v757 = vld [vmem:[%s6] sm:$0xff]
    %v759 = vsel %vm44, %v757, 0
    %761 = vmatpush.msra.mxu0 0.0
    %762 = vmatpush.msra.mxu0 0.0
    %763 = vmatpush.msra.mxu0 0.0
    %764 = vmatpush.msra.mxu0 0.0
    %765 = vmatpush.msra.mxu0 0.0
    %766 = vmatpush.msra.mxu0 0.0
    %767 = vmatpush.msra.mxu0 0.0
    %768 = vmatpush.msra.mxu0 0.0
    %769 = vmatpush.msra.mxu0 0.0
    %770 = vmatpush.msra.mxu0 0.0
    %771 = vmatpush.msra.mxu0 0.0
    %772 = vmatpush.msra.mxu0 0.0
    %773 = vmatpush.msra.mxu0 0.0
    %774 = vmatpush.msra.mxu0 0.0
    %775 = vmatpush.msra.mxu0 %v732
    %776 = vmatpush.msra.mxu0 %v731
    %777 = vmatmul.f32.gmra.mxu0 %v759
    %v778 = vpop.f32.mrf.mxu0
    %v779 = vadd.f32 0.0, %v778
    %780 = vdwg.mxu0
    %v781 = vmul.f32 %v755, %v779
    %v782 = vld [vmem:[%s7 + $0xf0] sm:$0x1]
    %v783 = vld [vmem:[%s7 + $0xf8] sm:$0x1]
    %785 = vset.pattern.permute.xlu0 0
    %786 = vperm.xlu0 %785, %v783
    %v787 = vpop.permute.xlu0 %786
    %789 = vmatpush.xpose.msra.mxu0 0.0
    %790 = vmatpush.xpose.msra.mxu0 0.0
    %791 = vmatpush.xpose.msra.mxu0 0.0
    %792 = vmatpush.xpose.msra.mxu0 0.0
    %793 = vmatpush.xpose.msra.mxu0 0.0
    %794 = vmatpush.xpose.msra.mxu0 0.0
    %795 = vmatpush.xpose.msra.mxu0 0.0
    %796 = vmatpush.xpose.msra.mxu0 0.0
    %797 = vmatpush.xpose.msra.mxu0 0.0
    %798 = vmatpush.xpose.msra.mxu0 0.0
    %799 = vmatpush.xpose.msra.mxu0 0.0
    %800 = vmatpush.xpose.msra.mxu0 0.0
    %801 = vmatpush.xpose.msra.mxu0 0.0
    %802 = vmatpush.xpose.msra.mxu0 0.0
    %803 = vmatpush.xpose.msra.mxu0 0.0
    %804 = vmatpush.xpose.msra.mxu0 %v781
    %805 = vmatmul.f32.gmra.mxu0 %v782
    %v806 = vpop.f32.mrf.mxu0
    %v807 = vadd.f32 %v787, %v806
    %808 = vdwg.mxu0
    %v809 = vxor.u32 %v807, 2147483648
    %v810 = vmul.f32 %v809, 1.442695
    %v811 = vpow.pop %v810
    %v812 = vadd.f32 %v811, 1.0
    %v813 = vrcp.pop %v812
    %v814 = vmul.f32 %v812, %v813
    %v815 = vsub.f32 1.0, %v814
    %v816 = vmul.f32 %v813, %v815
    %v817 = vadd.f32 %v813, %v816
    %vm818 = vweird.f32 %v812
    %vm819 = vweird.f32 %v813
    %vm820 = vmor %vm818, %vm819
    %v821 = vsel %vm820, %v813, %v817
    %v822 = vand.u32 2147483647, %v812
    %vm823 = vcmp.eq.f32.partialorder %v822, 8.507059e+37
    %v824 = vand.u32 %v812, 2147483648
    %v825 = vor.u32 1.1754944e-38, %v824
    %v826 = vsel %vm823, %v825, %v821
    %v827 = vmul.f32 1.0, %v826
    %vm828 = vcmask 57344
    %829 = vst.msk [vmem:[#allocation2] sm:$0x1] %vm828, %v827
    // Predicated region
    $region34: #{minimda_forward.1} parent=1 // pred_check
      _
    $region35: #{minimda_forward.1} parent=1 // pred_check_branch
      %831 = sbr.rel (0) target = $region37
    $region36: #{minimda_forward.1} parent=1 // pred_region
      %833 = vsyncadd [#allocation3], 0
      %s835 = sshll.u32 [#allocation2], 4
      %s836 = int_to_ptr.vmem [resolvable:$true] %s835
      %s837 = sshll.u32 %s8, 4
      %s838 = int_to_ptr.hbm [resolvable:$true] %s837
      %840 = dma.vmem_to_hbm [thread:$0]  %s836, 16, %s838, [#allocation3]
    $region37: #{minimda_forward.1} parent=1 // pred_fallthru
      _
    // Predicated region
    $region38: #{minimda_forward.1} parent=1 // pred_check
      _
    $region39: #{minimda_forward.1} parent=1 // pred_check_branch
      %842 = sbr.rel (0) target = $region41
    $region40: #{minimda_forward.1} parent=1 // pred_region
      %844 = dma.done [#allocation3], 16
    $region41: #{minimda_forward.1} parent=1 // pred_fallthru
      _
    %845 = vsyncpa [#allocation3], 1

</llo_original>
